<compile_context>
chip_gen: v7x
topology: tpu7x:2x2x1
jax: 0.10.0
libtpu: 0.0.40
codegen_flags: <defaults>
</compile_context>

<pallas_src>
import jax
import jax.numpy as jnp
from jax import lax
from jax.experimental import pallas as pl
from jax.experimental.pallas import tpu as pltpu

_LANE = 128


def _round_up(n, m):
    return ((n + m - 1) // m) * m


def _cdiv(a, b):
    return (a + b - 1) // b


# -----------------------------------------------------------------------------
# Kernel
# -----------------------------------------------------------------------------
def npid_head_kernel(x_ref, w_ref, b_ref, o_ref):
    # Linear: y = x @ W^T + b.  MXU with f32 accumulation regardless of the
    # input dtype; bias is kept in f32.
    y = jnp.dot(x_ref[...], w_ref[...], preferred_element_type=jnp.float32)
    y = y + b_ref[...]
    # Per-row L2 normalize.  torch F.normalize: y / max(||y||, 1e-12).
    # Equivalent (few-ULP diff) rsqrt form keeps the divide on the EUP:
    #   y * rsqrt(max(sum(y^2), eps^2)),  eps^2 = 1e-24 (still a normal f32).
    # NOTE: the reduction is strictly per-row, so ragged boundary tiles
    # (rows past the true batch; their stores are masked by Pallas) cannot
    # contaminate valid rows even if they hold garbage.
    sq = jnp.sum(y * y, axis=-1, keepdims=True)
    inv = lax.rsqrt(jnp.maximum(sq, 1e-24))
    o_ref[...] = (y * inv).astype(o_ref.dtype)


# -----------------------------------------------------------------------------
# One-time parameter prep (do at init, not per call)
# -----------------------------------------------------------------------------
def prepare_npid_params(weight, bias, *, lane=_LANE, weight_dtype=None):
    """weight: (out_dim, in_dim) PyTorch nn.Linear layout; bias: (out_dim,).

    Returns (w_t, b2d):
      w_t : (in_dim, out_pad) pre-transposed, zero-padded so out_pad % 128 == 0,
            optionally cast to weight_dtype (e.g. bf16) here — never per call.
      b2d : (1, out_pad) bias, always float32.
    Zero-padded columns contribute 0 to the row norm, so normalization of the
    real columns is unchanged.
    """
    out_dim, in_dim = weight.shape
    out_pad = _round_up(out_dim, lane)
    w_t = weight.T
    b = bias.astype(jnp.float32)
    if out_pad != out_dim:
        w_t = jnp.pad(w_t, ((0, 0), (0, out_pad - out_dim)))
        b = jnp.pad(b, (0, out_pad - out_dim))
    if weight_dtype is not None:
        w_t = w_t.astype(weight_dtype)
    return w_t, b.reshape(1, out_pad)


# -----------------------------------------------------------------------------
# Hardware-aware sizing helpers
# -----------------------------------------------------------------------------
def _vmem_budget_bytes():
    # ~80% of physical per-core VMEM: v5e/v6e 128 MiB -> ~102 MiB,
    # v7x 64 MiB -> ~51 MiB.  Conservative fallback works on every generation.
    try:
        cap = int(pltpu.get_tpu_info().vmem_capacity_bytes)
        if cap > 0:
            return int(cap * 0.8)
    except Exception:
        pass
    return 48 << 20


def _is_v7x():
    try:
        return "v7" in jax.devices()[0].device_kind.lower()
    except Exception:
        return False


# -----------------------------------------------------------------------------
# Forward wrapper
# -----------------------------------------------------------------------------
def npid_head(x, w_t, b2d, out_dim=None, *, out_dtype=None, max_tile_b=1024,
              core_parallel=None, keep_padded=False):
    """NPIDHead forward: normalize(x @ W^T + b) per row.

    x        : (B, in_dim)   (pass bf16 x only if it is *stored* in bf16 upstream)
    w_t, b2d : from prepare_npid_params
    out_dtype: output dtype (default x.dtype); bf16 halves output HBM writes.
    keep_padded: return the (B, out_pad) lane-padded array (padded cols are 0)
                 to avoid an extra HBM slice pass when out_dim % 128 != 0.
    """
    B, in_dim = x.shape
    in_dim_w, out_pad = w_t.shape
    assert in_dim_w == in_dim, "w_t must be (in_dim, out_pad) from prepare_npid_params"
    if out_dim is None:
        out_dim = out_pad
    if out_dtype is None:
        out_dtype = x.dtype
    if core_parallel is None:
        core_parallel = _is_v7x()   # split the batch axis across v7x's 2 TCs

    x_bytes = jnp.dtype(x.dtype).itemsize
    w_bytes = jnp.dtype(w_t.dtype).itemsize
    o_bytes = jnp.dtype(out_dtype).itemsize

    # Derive the batch tile from the VMEM budget (the kernel is HBM-bound on
    # streaming x, so the biggest tile that fits wins).
    budget = _vmem_budget_bytes()
    headroom = 4 << 20
    # W/bias counted double-buffered here (conservative: covers the fallback
    # path even though we request single buffering below).
    w_resident = 2 * (in_dim + 1) * out_pad * w_bytes
    per_row = 2 * (in_dim * x_bytes + out_pad * o_bytes)   # dbl-buffered x + out tiles
    tile_cap = (budget - headroom - w_resident) // per_row
    tile_cap = max(16, min(int(max_tile_b), (int(tile_cap) // 16) * 16))
    # TODO(synk): if in_dim*out_pad ever approaches the VMEM budget, add an
    # N-tiling grid axis with a two-pass norm instead of keeping full W^T resident.

    # Clamp to the batch, then rebalance so the last (ragged) tile is not
    # mostly padding and steps split evenly (matters for core_parallel on v7x).
    tile_b = min(tile_cap, _round_up(B, 16))
    n_steps = _cdiv(B, tile_b)
    if core_parallel and n_steps < 2 and B > 16:
        n_steps = 2
    tile_b = max(16, _round_up(_cdiv(B, n_steps), 16))
    grid = (_cdiv(B, tile_b),)

    dim_sem = (pltpu.CORE_PARALLEL,) if core_parallel else ("parallel",)
    vmem_limit = int(min(budget, 128 << 20))

    def _call(single_buffer_w):
        # Resident W^T / bias are revisited every grid step; single-buffering
        # them frees VMEM for larger x tiles.
        w_kw = dict(pipeline_mode=pl.Buffered(1)) if single_buffer_w else {}
        return pl.pallas_call(
            npid_head_kernel,
            out_shape=jax.ShapeDtypeStruct((B, out_pad), out_dtype),
            grid_spec=pltpu.PrefetchScalarGridSpec(
                num_scalar_prefetch=0,
                grid=grid,
                in_specs=[
                    pl.BlockSpec((tile_b, in_dim), lambda i: (i, 0)),          # x (streamed)
                    pl.BlockSpec((in_dim, out_pad), lambda i: (0, 0), **w_kw),  # W^T (resident)
                    pl.BlockSpec((1, out_pad), lambda i: (0, 0), **w_kw),       # bias (resident)
                ],
                out_specs=pl.BlockSpec((tile_b, out_pad), lambda i: (i, 0)),
            ),
            compiler_params=pltpu.CompilerParams(
                dimension_semantics=dim_sem,
                vmem_limit_bytes=vmem_limit,
            ),
        )(x, w_t, b2d)

    try:
        out_padded = _call(single_buffer_w=True)
    except Exception:
        # TODO(synk): pl.Buffered(1) single-buffering not supported by this jax
        # version; fall back to default double buffering (same results).
        out_padded = _call(single_buffer_w=False)

    if keep_padded or out_dim == out_pad:
        return out_padded
    # NOTE: this slice is an extra HBM read+write of the output; perf-sensitive
    # callers should pass keep_padded=True or use out_dim % 128 == 0.
    return out_padded[:, :out_dim]


# -----------------------------------------------------------------------------
# Self-test
# -----------------------------------------------------------------------------
def _reference(x, weight, bias):
    y = x @ weight.T + bias
    denom = jnp.maximum(jnp.linalg.norm(y, axis=-1, keepdims=True), 1e-12)
    return y / denom


if __name__ == "__main__":
    key = jax.random.PRNGKey(0)

    def _make_case(k, B, in_dim, out_dim):
        kx, kw, kb = jax.random.split(k, 3)
        bound = 1.0 / (in_dim ** 0.5)
        weight = jax.random.uniform(kw, (out_dim, in_dim), jnp.float32, -bound, bound)
        bias = jax.random.uniform(kb, (out_dim,), jnp.float32, -bound, bound)
        x = jax.random.normal(kx, (B, in_dim), jnp.float32)
        return x, weight, bias

    k1, k2 = jax.random.split(key)

    # Case 1: lane-dense output (out_dim multiple of 128) -> no padding, no slice.
    x1, w1, b1 = _make_case(k1, B=48, in_dim=64, out_dim=128)
    wt1, bb1 = prepare_npid_params(w1, b1)
    out1 = jax.block_until_ready(npid_head(x1, wt1, bb1, out_dim=128))
    ref1 = _reference(x1, w1, b1)
    assert out1.shape == ref1.shape, "case1 shape mismatch"
    assert jnp.allclose(out1, ref1, atol=1e-5, rtol=1e-5), "case1 mismatch vs reference"

    # Case 2: ragged batch + small out_dim (padded to 128, then sliced).
    x2, w2, b2 = _make_case(k2, B=20, in_dim=32, out_dim=16)
    wt2, bb2 = prepare_npid_params(w2, b2)
    out2 = jax.block_until_ready(npid_head(x2, wt2, bb2, out_dim=16))
    ref2 = _reference(x2, w2, b2)
    assert out2.shape == ref2.shape, "case2 shape mismatch"
    assert jnp.allclose(out2, ref2, atol=1e-5, rtol=1e-5), "case2 mismatch vs reference"

    print("KERNEL_OK")
</pallas_src>

<mosaic_0001>
module attributes {stable_mosaic.version = 11 : i64} {
  func.func @npid_head_kernel(%arg0: i32, %arg1: memref<48x64xf32, #tpu.memory_space<vmem>>, %arg2: memref<64x128xf32, #tpu.memory_space<vmem>>, %arg3: memref<1x128xf32, #tpu.memory_space<vmem>>, %arg4: memref<48x128xf32, #tpu.memory_space<vmem>>) attributes {dimension_semantics = [#tpu.dimension_semantics<parallel>], iteration_bounds = array<i64: 1>, scalar_prefetch = 0 : i64, scratch_operands = 0 : i64, tpu.core_type = #tpu.core_type<tc>, window_params = [{transform_indices = @transform_0, window_bounds = array<i64: 48, 64>}, {pipeline_mode = #tpu.pipeline_mode<synchronous>, transform_indices = @transform_1, window_bounds = array<i64: 64, 128>}, {pipeline_mode = #tpu.pipeline_mode<synchronous>, transform_indices = @transform_2, window_bounds = array<i64: 1, 128>}, {transform_indices = @transform_3, window_bounds = array<i64: 48, 128>}]} {
    %c0 = arith.constant 0 : index
    %c0_0 = arith.constant 0 : index
    %0 = vector.load %arg1[%c0, %c0_0] : memref<48x64xf32, #tpu.memory_space<vmem>>, vector<48x64xf32>
    %c0_1 = arith.constant 0 : index
    %c0_2 = arith.constant 0 : index
    %1 = vector.load %arg2[%c0_1, %c0_2] : memref<64x128xf32, #tpu.memory_space<vmem>>, vector<64x128xf32>
    %cst = arith.constant dense<0.000000e+00> : vector<48x128xf32>
    %2 = tpu.matmul %0, %1, %cst {dimension_numbers = #tpu.dot_dimension_numbers<[1], [0], [0], [1], [0, 0, 1, 1], [], []>} : vector<48x64xf32>, vector<64x128xf32>, vector<48x128xf32> -> vector<48x128xf32>
    %c0_3 = arith.constant 0 : index
    %c0_4 = arith.constant 0 : index
    %3 = vector.load %arg3[%c0_3, %c0_4] : memref<1x128xf32, #tpu.memory_space<vmem>>, vector<1x128xf32>
    %4 = vector.broadcast %3 : vector<1x128xf32> to vector<48x128xf32>
    %5 = arith.addf %2, %4 : vector<48x128xf32>
    %6 = arith.mulf %5, %5 : vector<48x128xf32>
    %cst_5 = arith.constant dense<0.000000e+00> : vector<48xf32>
    %7 = vector.multi_reduction <add>, %6, %cst_5 [1] : vector<48x128xf32> to vector<48xf32>
    %8 = vector.shape_cast %7 : vector<48xf32> to vector<48x1xf32>
    %cst_6 = arith.constant 1.000000e-24 : f32
    %9 = vector.broadcast %cst_6 : f32 to vector<48x1xf32>
    %10 = arith.maximumf %8, %9 : vector<48x1xf32>
    %11 = math.rsqrt %10 : vector<48x1xf32>
    %12 = vector.broadcast %11 : vector<48x1xf32> to vector<48x128xf32>
    %13 = arith.mulf %5, %12 : vector<48x128xf32>
    %c0_7 = arith.constant 0 : index
    %c0_8 = arith.constant 0 : index
    %14 = vector.load %arg4[%c0_7, %c0_8] : memref<48x128xf32, #tpu.memory_space<vmem>>, vector<48x128xf32>
    tpu.vector_store %arg4[%c0_7, %c0_8], %13 {strides = array<i32>} : memref<48x128xf32, #tpu.memory_space<vmem>>, vector<48x128xf32>,
    return
  }
  func.func @transform_0(%arg0: i32) -> (i32, i32) {
    %c0_i32 = arith.constant 0 : i32
    %c0_i32_0 = arith.constant 0 : i32
    return %arg0, %c0_i32 : i32, i32
  }
  func.func @transform_1(%arg0: i32) -> (i32, i32) {
    %c0_i32 = arith.constant 0 : i32
    %c0_i32_0 = arith.constant 0 : i32
    %c0_i32_1 = arith.constant 0 : i32
    return %c0_i32, %c0_i32_0 : i32, i32
  }
  func.func @transform_2(%arg0: i32) -> (i32, i32) {
    %c0_i32 = arith.constant 0 : i32
    %c0_i32_0 = arith.constant 0 : i32
    %c0_i32_1 = arith.constant 0 : i32
    return %c0_i32, %c0_i32_0 : i32, i32
  }
  func.func @transform_3(%arg0: i32) -> (i32, i32) {
    %c0_i32 = arith.constant 0 : i32
    %c0_i32_0 = arith.constant 0 : i32
    return %arg0, %c0_i32 : i32, i32
  }
}

module attributes {stable_mosaic.version = 11 : i64} {
  func.func @npid_head_kernel(%arg0: i32, %arg1: memref<48x64xf32, #tpu.memory_space<vmem>>, %arg2: memref<64x128xf32, #tpu.memory_space<vmem>>, %arg3: memref<1x128xf32, #tpu.memory_space<vmem>>, %arg4: memref<48x128xf32, #tpu.memory_space<vmem>>) attributes {dimension_semantics = [#tpu.dimension_semantics<parallel>], iteration_bounds = array<i64: 1>, scalar_prefetch = 0 : i64, scratch_operands = 0 : i64, tpu.core_type = #tpu.core_type<tc>, window_params = [{transform_indices = @transform_0, window_bounds = array<i64: 48, 64>}, {pipeline_mode = #tpu.pipeline_mode<synchronous>, transform_indices = @transform_1, window_bounds = array<i64: 64, 128>}, {pipeline_mode = #tpu.pipeline_mode<synchronous>, transform_indices = @transform_2, window_bounds = array<i64: 1, 128>}, {transform_indices = @transform_3, window_bounds = array<i64: 48, 128>}]} {
    %c0 = arith.constant 0 : index
    %c0_0 = arith.constant 0 : index
    %0 = vector.load %arg1[%c0, %c0_0] : memref<48x64xf32, #tpu.memory_space<vmem>>, vector<48x64xf32>
    %c0_1 = arith.constant 0 : index
    %c0_2 = arith.constant 0 : index
    %1 = vector.load %arg2[%c0_1, %c0_2] : memref<64x128xf32, #tpu.memory_space<vmem>>, vector<64x128xf32>
    %cst = arith.constant dense<0.000000e+00> : vector<48x128xf32>
    %2 = tpu.matmul %0, %1, %cst {dimension_numbers = #tpu.dot_dimension_numbers<[1], [0], [0], [1], [0, 0, 1, 1], [], []>} : vector<48x64xf32>, vector<64x128xf32>, vector<48x128xf32> -> vector<48x128xf32>
    %c0_3 = arith.constant 0 : index
    %c0_4 = arith.constant 0 : index
    %3 = vector.load %arg3[%c0_3, %c0_4] : memref<1x128xf32, #tpu.memory_space<vmem>>, vector<1x128xf32>
    %4 = vector.broadcast %3 : vector<1x128xf32> to vector<48x128xf32>
    %5 = arith.addf %2, %4 : vector<48x128xf32>
    %6 = arith.mulf %5, %5 : vector<48x128xf32>
    %cst_5 = arith.constant dense<0.000000e+00> : vector<48xf32>
    %7 = vector.multi_reduction <add>, %6, %cst_5 [1] : vector<48x128xf32> to vector<48xf32>
    %8 = vector.shape_cast %7 : vector<48xf32> to vector<48x1xf32>
    %cst_6 = arith.constant 1.000000e-24 : f32
    %9 = vector.broadcast %cst_6 : f32 to vector<48x1xf32>
    %10 = arith.maximumf %8, %9 : vector<48x1xf32>
    %11 = math.rsqrt %10 : vector<48x1xf32>
    %12 = vector.broadcast %11 : vector<48x1xf32> to vector<48x128xf32>
    %13 = arith.mulf %5, %12 : vector<48x128xf32>
    %c0_7 = arith.constant 0 : index
    %c0_8 = arith.constant 0 : index
    %14 = vector.load %arg4[%c0_7, %c0_8] : memref<48x128xf32, #tpu.memory_space<vmem>>, vector<48x128xf32>
    tpu.vector_store %arg4[%c0_7, %c0_8], %13 {strides = array<i32>} : memref<48x128xf32, #tpu.memory_space<vmem>>, vector<48x128xf32>,
    return
  }
  func.func @transform_0(%arg0: i32) -> (i32, i32) {
    %c0_i32 = arith.constant 0 : i32
    %c0_i32_0 = arith.constant 0 : i32
    return %arg0, %c0_i32 : i32, i32
  }
  func.func @transform_1(%arg0: i32) -> (i32, i32) {
    %c0_i32 = arith.constant 0 : i32
    %c0_i32_0 = arith.constant 0 : i32
    %c0_i32_1 = arith.constant 0 : i32
    return %c0_i32, %c0_i32_0 : i32, i32
  }
  func.func @transform_2(%arg0: i32) -> (i32, i32) {
    %c0_i32 = arith.constant 0 : i32
    %c0_i32_0 = arith.constant 0 : i32
    %c0_i32_1 = arith.constant 0 : i32
    return %c0_i32, %c0_i32_0 : i32, i32
  }
  func.func @transform_3(%arg0: i32) -> (i32, i32) {
    %c0_i32 = arith.constant 0 : i32
    %c0_i32_0 = arith.constant 0 : i32
    return %arg0, %c0_i32 : i32, i32
  }
}

</mosaic_0001>

<llo_original>
// kernel: tpu_custom_call.1
$region0: #{tpu_custom_call.1}
  #allocation0 [shape = 'u32[]', space=smem, size = 0x4, offset = 0x4, fixed_abs, tag = 'smem constant byte address 0x4 - core index']
  #allocation1 [shape = 'u32[144,128]{1,0:T(1,128)}', space=vmem, size = 0x12000, scoped, tag = 'internal scratch']
  %s0 = inlined_call_operand.hbm [shape: f32[48,64], index: 0, kind: input, shape index: {}]
  %s1 = inlined_call_operand.hbm [shape: f32[64,128], index: 1, kind: input, shape index: {}]
  %s2 = inlined_call_operand.vmem [shape: f32[1,128], index: 2, kind: input, shape index: {}]
  %s3 = inlined_call_operand.hbm [shape: f32[48,128], index: 3, kind: output, shape index: {}]
  %s4 = sld [smem:[#allocation0]]
  $region30: #{tpu_custom_call.1} parent=0
    _
  %s6 = ssub.s32 1, %s4
  %s7 = scalar_select 0, %s6, %s4
  $region1: #{tpu_custom_call.1} parent=0
    #allocation2 [shape = 'u8[24576]{0}', space=vmem, size = 0x6000, scoped, tag = 'input window, operand 0, single buffered']
    #allocation3 [shape = 's32[1]{0}', space=sflag, size = 0x4, scoped, tag = 'scoped memory for tpu_custom_call.1']
    #allocation4 [shape = 's32[1]{0}', space=sflag, size = 0x4, scoped, tag = 'scoped memory for tpu_custom_call.1']
    #allocation5 [shape = 'u8[32768]{0}', space=vmem, size = 0x8000, scoped, tag = 'input window, operand 1, single buffered']
    #allocation6 [shape = 's32[1]{0}', space=sflag, size = 0x4, scoped, tag = 'scoped memory for tpu_custom_call.1']
    #allocation7 [shape = 'u8[24576]{0}', space=vmem, size = 0x6000, scoped, tag = 'output window, operand 0, single buffered']
    %8 = vsyncpa [#allocation3], 0
    %9 = vsyncpa [#allocation6], 0
    %10 = vsyncpa [#allocation4], 0
    // Predicated region
    $region2: #{tpu_custom_call.1} parent=1 // pred_check
      _
    $region3: #{tpu_custom_call.1} parent=1 // pred_check_branch
      %12 = sbr.rel (0) target = $region5
    $region4: #{tpu_custom_call.1} parent=1 // pred_region
      %s14 = ssub.s32 768, 768
      %15 = vsyncadd [#allocation3], %s14
      %s16 = sshll.u32 [#allocation2], 4
      %s17 = int_to_ptr.vmem [resolvable:$true] %s16
      %22 = dma.hbm_to_vmem [thread:$0]  %s0, 768, %s17, [#allocation3], 128, 128, 8
    $region5: #{tpu_custom_call.1} parent=1 // pred_fallthru
      _
    // Predicated region
    $region6: #{tpu_custom_call.1} parent=1 // pred_check
      _
    $region7: #{tpu_custom_call.1} parent=1 // pred_check_branch
      %24 = sbr.rel (0) target = $region9
    $region8: #{tpu_custom_call.1} parent=1 // pred_region
      %s26 = ssub.s32 1024, 1024
      %27 = vsyncadd [#allocation6], %s26
      %s28 = sshll.u32 [#allocation5], 4
      %s29 = int_to_ptr.vmem [resolvable:$true] %s28
      %34 = dma.hbm_to_vmem [thread:$0]  %s1, 1024, %s29, [#allocation6], 128, 128, 8
    $region9: #{tpu_custom_call.1} parent=1 // pred_fallthru
      _
    // Predicated region
    $region10: #{tpu_custom_call.1} parent=1 // pred_check
      _
    $region11: #{tpu_custom_call.1} parent=1 // pred_check_branch
      %36 = sbr.rel (0) target = $region13
    $region12: #{tpu_custom_call.1} parent=1 // pred_region
      _
    $region13: #{tpu_custom_call.1} parent=1 // pred_fallthru
      _
    // Predicated region
    $region14: #{tpu_custom_call.1} parent=1 // pred_check
      _
    $region15: #{tpu_custom_call.1} parent=1 // pred_check_branch
      %38 = sbr.rel (0) target = $region17
    $region16: #{tpu_custom_call.1} parent=1 // pred_region
      %39 = dma.done [#allocation3], 768
    $region17: #{tpu_custom_call.1} parent=1 // pred_fallthru
      _
    // Predicated region
    $region18: #{tpu_custom_call.1} parent=1 // pred_check
      _
    $region19: #{tpu_custom_call.1} parent=1 // pred_check_branch
      %41 = sbr.rel (0) target = $region21
    $region20: #{tpu_custom_call.1} parent=1 // pred_region
      %42 = dma.done [#allocation6], 1024
    $region21: #{tpu_custom_call.1} parent=1 // pred_fallthru
      _
    %v43 = vld [vmem:[#allocation2] sm:$0xff]
    %v44 = vld [vmem:[#allocation2 + $0x8] sm:$0xff]
    %v45 = vld [vmem:[#allocation2 + $0x10] sm:$0xff]
    %v46 = vld [vmem:[#allocation2 + $0x18] sm:$0xff]
    %v47 = vld [vmem:[#allocation2 + $0x20] sm:$0xff]
    %v48 = vld [vmem:[#allocation2 + $0x28] sm:$0xff]
    %v49 = vld [vmem:[#allocation5] sm:$0xff]
    %v50 = vld [vmem:[#allocation5 + $0x8] sm:$0xff]
    %v51 = vld [vmem:[#allocation5 + $0x10] sm:$0xff]
    %v52 = vld [vmem:[#allocation5 + $0x18] sm:$0xff]
    %v53 = vld [vmem:[#allocation5 + $0x20] sm:$0xff]
    %v54 = vld [vmem:[#allocation5 + $0x28] sm:$0xff]
    %v55 = vld [vmem:[#allocation5 + $0x30] sm:$0xff]
    %v56 = vld [vmem:[#allocation5 + $0x38] sm:$0xff]
    %v57 = vld [vmem:[%s2] sm:$0x1]
    %v59 = vlaneseq
    %v60 = vshrl.u32 %v59, 7
    %v61 = vsub.s32 0, %v60
    %v62 = vrot.slane %v57, %v61
    %vm64 = vcmask 523264
    %v66 = vsel %vm64, %v43, 0
    %v69 = vsel %vm64, %v44, 0
    %v72 = vsel %vm64, %v45, 0
    %v75 = vsel %vm64, %v46, 0
    %v78 = vsel %vm64, %v47, 0
    %v81 = vsel %vm64, %v48, 0
    %83 = vmatprep.subr.mxu0 0.0
    %84 = vmatpush1.msra.mxu0 %v49
    %85 = vmatprep.subr.mxu0 0.0
    %86 = vmatpush1.msra.mxu0 %v50
    %87 = vmatprep.subr.mxu0 0.0
    %88 = vmatpush1.msra.mxu0 %v51
    %89 = vmatprep.subr.mxu0 0.0
    %90 = vmatpush1.msra.mxu0 %v52
    %91 = vmatprep.subr.mxu0 0.0
    %92 = vmatpush1.msra.mxu0 %v53
    %93 = vmatprep.subr.mxu0 0.0
    %94 = vmatpush1.msra.mxu0 %v54
    %95 = vmatprep.subr.mxu0 0.0
    %96 = vmatpush1.msra.mxu0 %v55
    %97 = vmatprep.subr.mxu0 0.0
    %98 = vmatpush1.msra.mxu0 %v56
    %99 = vmatprep.subr.mxu0 0.0
    %100 = vmatpush1.msra.mxu0 0.0
    %101 = vmatprep.subr.mxu0 0.0
    %102 = vmatpush1.msra.mxu0 0.0
    %103 = vmatprep.subr.mxu0 0.0
    %104 = vmatpush1.msra.mxu0 0.0
    %105 = vmatprep.subr.mxu0 0.0
    %106 = vmatpush1.msra.mxu0 0.0
    %107 = vmatprep.subr.mxu0 0.0
    %108 = vmatpush1.msra.mxu0 0.0
    %109 = vmatprep.subr.mxu0 0.0
    %110 = vmatpush1.msra.mxu0 0.0
    %111 = vmatprep.subr.mxu0 0.0
    %112 = vmatpush1.msra.mxu0 0.0
    %113 = vmatprep.subr.mxu0 0.0
    %114 = vmatpush1.msra.mxu0 0.0
    %115 = vmatprep.subr.mxu0 0.0
    %116 = vmatpush1.msra.mxu0 0.0
    %117 = vmatprep.subr.mxu0 0.0
    %118 = vmatpush1.msra.mxu0 0.0
    %119 = vmatprep.subr.mxu0 0.0
    %120 = vmatpush1.msra.mxu0 0.0
    %121 = vmatprep.subr.mxu0 0.0
    %122 = vmatpush1.msra.mxu0 0.0
    %123 = vmatprep.subr.mxu0 0.0
    %124 = vmatpush1.msra.mxu0 0.0
    %125 = vmatprep.subr.mxu0 0.0
    %126 = vmatpush1.msra.mxu0 0.0
    %127 = vmatprep.subr.mxu0 0.0
    %128 = vmatpush1.msra.mxu0 0.0
    %129 = vmatprep.subr.mxu0 0.0
    %130 = vmatpush1.msra.mxu0 0.0
    %131 = vmatprep.subr.mxu0 0.0
    %132 = vmatpush1.msra.mxu0 0.0
    %133 = vmatprep.subr.mxu0 0.0
    %134 = vmatpush1.msra.mxu0 0.0
    %135 = vmatprep.subr.mxu0 0.0
    %136 = vmatpush1.msra.mxu0 0.0
    %137 = vmatprep.subr.mxu0 0.0
    %138 = vmatpush1.msra.mxu0 0.0
    %139 = vmatprep.subr.mxu0 0.0
    %140 = vmatpush1.msra.mxu0 0.0
    %141 = vmatprep.subr.mxu0 0.0
    %142 = vmatpush1.msra.mxu0 0.0
    %143 = vmatprep.subr.mxu0 0.0
    %144 = vmatpush1.msra.mxu0 0.0
    %145 = vmatprep.subr.mxu0 0.0
    %146 = vmatpush1.msra.mxu0 0.0
    %147 = vmatprep.mubr.f32.mxu0 0.0
    %148 = vmatmul.mubr.f32.gmra.mrb[0].mxu0 %v66
    %v149 = vpop.f32.mrb[0].mxu0
    %v150 = vadd.f32 %v62, %v149
    %v151 = vpop.f32.mrb[0].mxu0
    %152 = vmatprep.mubr.f32.mxu0 0.0
    %153 = vmatmul.mubr.f32.gmra.mrb[0].mxu0 %v69
    %v154 = vpop.f32.mrb[0].mxu0
    %v155 = vadd.f32 %v62, %v154
    %v156 = vpop.f32.mrb[0].mxu0
    %157 = vmatprep.mubr.f32.mxu0 0.0
    %158 = vmatmul.mubr.f32.gmra.mrb[0].mxu0 %v72
    %v159 = vpop.f32.mrb[0].mxu0
    %v160 = vadd.f32 %v62, %v159
    %v161 = vpop.f32.mrb[0].mxu0
    %162 = vmatprep.mubr.f32.mxu0 0.0
    %163 = vmatmul.mubr.f32.gmra.mrb[0].mxu0 %v75
    %v164 = vpop.f32.mrb[0].mxu0
    %v165 = vadd.f32 %v62, %v164
    %v166 = vpop.f32.mrb[0].mxu0
    %167 = vmatprep.mubr.f32.mxu0 0.0
    %168 = vmatmul.mubr.f32.gmra.mrb[0].mxu0 %v78
    %v169 = vpop.f32.mrb[0].mxu0
    %v170 = vadd.f32 %v62, %v169
    %v171 = vpop.f32.mrb[0].mxu0
    %172 = vmatprep.mubr.f32.mxu0 0.0
    %173 = vmatmul.mubr.f32.gmra.mrb[0].mxu0 %v81
    %v174 = vpop.f32.mrb[0].mxu0
    %v175 = vadd.f32 %v62, %v174
    %v176 = vpop.f32.mrb[0].mxu0
    %177 = vdwg.mxu0
    %v178 = vmul.f32 %v150, %v150
    %v179 = vmul.f32 %v155, %v155
    %v180 = vmul.f32 %v160, %v160
    %v181 = vmul.f32 %v165, %v165
    %v182 = vmul.f32 %v170, %v170
    %v183 = vmul.f32 %v175, %v175
    %184 = vadd.xlane.f32.xlu0 %v178
    %v185 = vpop.xlane.xlu0 %184
    %186 = vadd.xlane.f32.xlu0 %v179
    %v187 = vpop.xlane.xlu0 %186
    %188 = vadd.xlane.f32.xlu0 %v180
    %v189 = vpop.xlane.xlu0 %188
    %190 = vadd.xlane.f32.xlu0 %v181
    %v191 = vpop.xlane.xlu0 %190
    %192 = vadd.xlane.f32.xlu0 %v182
    %v193 = vpop.xlane.xlu0 %192
    %194 = vadd.xlane.f32.xlu0 %v183
    %v195 = vpop.xlane.xlu0 %194
    %v196 = vmax.f32 %v185, 1e-24
    %v197 = vmax.f32 %v187, 1e-24
    %v198 = vmax.f32 %v189, 1e-24
    %v199 = vmax.f32 %v191, 1e-24
    %v200 = vmax.f32 %v193, 1e-24
    %v201 = vmax.f32 %v195, 1e-24
    %v202 = vrsqrt.pop %v196
    %v203 = vrsqrt.pop %v197
    %v204 = vrsqrt.pop %v198
    %v205 = vrsqrt.pop %v199
    %v206 = vrsqrt.pop %v200
    %v207 = vrsqrt.pop %v201
    %v208 = vmul.f32 %v150, %v202
    %v209 = vmul.f32 %v155, %v203
    %v210 = vmul.f32 %v160, %v204
    %v211 = vmul.f32 %v165, %v205
    %v212 = vmul.f32 %v170, %v206
    %v213 = vmul.f32 %v175, %v207
    %214 = vst [vmem:[#allocation7] sm:$0xff] %v208
    %215 = vst [vmem:[#allocation7 + $0x8] sm:$0xff] %v209
    %216 = vst [vmem:[#allocation7 + $0x10] sm:$0xff] %v210
    %217 = vst [vmem:[#allocation7 + $0x18] sm:$0xff] %v211
    %218 = vst [vmem:[#allocation7 + $0x20] sm:$0xff] %v212
    %219 = vst [vmem:[#allocation7 + $0x28] sm:$0xff] %v213
    // Predicated region
    $region22: #{tpu_custom_call.1} parent=1 // pred_check
      _
    $region23: #{tpu_custom_call.1} parent=1 // pred_check_branch
      %221 = sbr.rel (0) target = $region25
    $region24: #{tpu_custom_call.1} parent=1 // pred_region
      %s223 = ssub.s32 768, 768
      %224 = vsyncadd [#allocation4], %s223
      %s225 = sshll.u32 [#allocation7], 4
      %s226 = int_to_ptr.vmem [resolvable:$true] %s225
      %231 = dma.vmem_to_hbm [thread:$0]  %s226, 768, %s3, [#allocation4], 128, 128, 8
    $region25: #{tpu_custom_call.1} parent=1 // pred_fallthru
      _
    // Predicated region
    $region26: #{tpu_custom_call.1} parent=1 // pred_check
      _
    $region27: #{tpu_custom_call.1} parent=1 // pred_check_branch
      %233 = sbr.rel (0) target = $region29
    $region28: #{tpu_custom_call.1} parent=1 // pred_region
      %234 = dma.done [#allocation4], 768
    $region29: #{tpu_custom_call.1} parent=1 // pred_fallthru
      _
    %235 = vsyncpa [#allocation3], 1
    %236 = vsyncpa [#allocation6], 1
    %237 = vsyncpa [#allocation4], 1

// kernel: tpu_custom_call.1
$region0: #{tpu_custom_call.1}
  #allocation0 [shape = 'u32[]', space=smem, size = 0x4, offset = 0x4, fixed_abs, tag = 'smem constant byte address 0x4 - core index']
  #allocation1 [shape = 'u32[144,128]{1,0:T(1,128)}', space=vmem, size = 0x12000, scoped, tag = 'internal scratch']
  %s0 = inlined_call_operand.hbm [shape: f32[48,64], index: 0, kind: input, shape index: {}]
  %s1 = inlined_call_operand.hbm [shape: f32[64,128], index: 1, kind: input, shape index: {}]
  %s2 = inlined_call_operand.vmem [shape: f32[1,128], index: 2, kind: input, shape index: {}]
  %s3 = inlined_call_operand.hbm [shape: f32[48,128], index: 3, kind: output, shape index: {}]
  %s4 = sld [smem:[#allocation0]]
  $region30: #{tpu_custom_call.1} parent=0
    _
  %s6 = ssub.s32 1, %s4
  %s7 = scalar_select 0, %s6, %s4
  $region1: #{tpu_custom_call.1} parent=0
    #allocation2 [shape = 'u8[24576]{0}', space=vmem, size = 0x6000, scoped, tag = 'input window, operand 0, single buffered']
    #allocation3 [shape = 's32[1]{0}', space=sflag, size = 0x4, scoped, tag = 'scoped memory for tpu_custom_call.1']
    #allocation4 [shape = 's32[1]{0}', space=sflag, size = 0x4, scoped, tag = 'scoped memory for tpu_custom_call.1']
    #allocation5 [shape = 'u8[32768]{0}', space=vmem, size = 0x8000, scoped, tag = 'input window, operand 1, single buffered']
    #allocation6 [shape = 's32[1]{0}', space=sflag, size = 0x4, scoped, tag = 'scoped memory for tpu_custom_call.1']
    #allocation7 [shape = 'u8[24576]{0}', space=vmem, size = 0x6000, scoped, tag = 'output window, operand 0, single buffered']
    %8 = vsyncpa [#allocation3], 0
    %9 = vsyncpa [#allocation6], 0
    %10 = vsyncpa [#allocation4], 0
    // Predicated region
    $region2: #{tpu_custom_call.1} parent=1 // pred_check
      _
    $region3: #{tpu_custom_call.1} parent=1 // pred_check_branch
      %12 = sbr.rel (0) target = $region5
    $region4: #{tpu_custom_call.1} parent=1 // pred_region
      %s14 = ssub.s32 768, 768
      %15 = vsyncadd [#allocation3], %s14
      %s16 = sshll.u32 [#allocation2], 4
      %s17 = int_to_ptr.vmem [resolvable:$true] %s16
      %22 = dma.hbm_to_vmem [thread:$0]  %s0, 768, %s17, [#allocation3], 128, 128, 8
    $region5: #{tpu_custom_call.1} parent=1 // pred_fallthru
      _
    // Predicated region
    $region6: #{tpu_custom_call.1} parent=1 // pred_check
      _
    $region7: #{tpu_custom_call.1} parent=1 // pred_check_branch
      %24 = sbr.rel (0) target = $region9
    $region8: #{tpu_custom_call.1} parent=1 // pred_region
      %s26 = ssub.s32 1024, 1024
      %27 = vsyncadd [#allocation6], %s26
      %s28 = sshll.u32 [#allocation5], 4
      %s29 = int_to_ptr.vmem [resolvable:$true] %s28
      %34 = dma.hbm_to_vmem [thread:$0]  %s1, 1024, %s29, [#allocation6], 128, 128, 8
    $region9: #{tpu_custom_call.1} parent=1 // pred_fallthru
      _
    // Predicated region
    $region10: #{tpu_custom_call.1} parent=1 // pred_check
      _
    $region11: #{tpu_custom_call.1} parent=1 // pred_check_branch
      %36 = sbr.rel (0) target = $region13
    $region12: #{tpu_custom_call.1} parent=1 // pred_region
      _
    $region13: #{tpu_custom_call.1} parent=1 // pred_fallthru
      _
    // Predicated region
    $region14: #{tpu_custom_call.1} parent=1 // pred_check
      _
    $region15: #{tpu_custom_call.1} parent=1 // pred_check_branch
      %38 = sbr.rel (0) target = $region17
    $region16: #{tpu_custom_call.1} parent=1 // pred_region
      %39 = dma.done [#allocation3], 768
    $region17: #{tpu_custom_call.1} parent=1 // pred_fallthru
      _
    // Predicated region
    $region18: #{tpu_custom_call.1} parent=1 // pred_check
      _
    $region19: #{tpu_custom_call.1} parent=1 // pred_check_branch
      %41 = sbr.rel (0) target = $region21
    $region20: #{tpu_custom_call.1} parent=1 // pred_region
      %42 = dma.done [#allocation6], 1024
    $region21: #{tpu_custom_call.1} parent=1 // pred_fallthru
      _
    %v43 = vld [vmem:[#allocation2] sm:$0xff]
    %v44 = vld [vmem:[#allocation2 + $0x8] sm:$0xff]
    %v45 = vld [vmem:[#allocation2 + $0x10] sm:$0xff]
    %v46 = vld [vmem:[#allocation2 + $0x18] sm:$0xff]
    %v47 = vld [vmem:[#allocation2 + $0x20] sm:$0xff]
    %v48 = vld [vmem:[#allocation2 + $0x28] sm:$0xff]
    %v49 = vld [vmem:[#allocation5] sm:$0xff]
    %v50 = vld [vmem:[#allocation5 + $0x8] sm:$0xff]
    %v51 = vld [vmem:[#allocation5 + $0x10] sm:$0xff]
    %v52 = vld [vmem:[#allocation5 + $0x18] sm:$0xff]
    %v53 = vld [vmem:[#allocation5 + $0x20] sm:$0xff]
    %v54 = vld [vmem:[#allocation5 + $0x28] sm:$0xff]
    %v55 = vld [vmem:[#allocation5 + $0x30] sm:$0xff]
    %v56 = vld [vmem:[#allocation5 + $0x38] sm:$0xff]
    %v57 = vld [vmem:[%s2] sm:$0x1]
    %v59 = vlaneseq
    %v60 = vshrl.u32 %v59, 7
    %v61 = vsub.s32 0, %v60
    %v62 = vrot.slane %v57, %v61
    %vm64 = vcmask 523264
    %v66 = vsel %vm64, %v43, 0
    %v69 = vsel %vm64, %v44, 0
    %v72 = vsel %vm64, %v45, 0
    %v75 = vsel %vm64, %v46, 0
    %v78 = vsel %vm64, %v47, 0
    %v81 = vsel %vm64, %v48, 0
    %83 = vmatprep.subr.mxu0 0.0
    %84 = vmatpush1.msra.mxu0 %v49
    %85 = vmatprep.subr.mxu0 0.0
    %86 = vmatpush1.msra.mxu0 %v50
    %87 = vmatprep.subr.mxu0 0.0
    %88 = vmatpush1.msra.mxu0 %v51
    %89 = vmatprep.subr.mxu0 0.0
    %90 = vmatpush1.msra.mxu0 %v52
    %91 = vmatprep.subr.mxu0 0.0
    %92 = vmatpush1.msra.mxu0 %v53
    %93 = vmatprep.subr.mxu0 0.0
    %94 = vmatpush1.msra.mxu0 %v54
    %95 = vmatprep.subr.mxu0 0.0
    %96 = vmatpush1.msra.mxu0 %v55
    %97 = vmatprep.subr.mxu0 0.0
    %98 = vmatpush1.msra.mxu0 %v56
    %99 = vmatprep.subr.mxu0 0.0
    %100 = vmatpush1.msra.mxu0 0.0
    %101 = vmatprep.subr.mxu0 0.0
    %102 = vmatpush1.msra.mxu0 0.0
    %103 = vmatprep.subr.mxu0 0.0
    %104 = vmatpush1.msra.mxu0 0.0
    %105 = vmatprep.subr.mxu0 0.0
    %106 = vmatpush1.msra.mxu0 0.0
    %107 = vmatprep.subr.mxu0 0.0
    %108 = vmatpush1.msra.mxu0 0.0
    %109 = vmatprep.subr.mxu0 0.0
    %110 = vmatpush1.msra.mxu0 0.0
    %111 = vmatprep.subr.mxu0 0.0
    %112 = vmatpush1.msra.mxu0 0.0
    %113 = vmatprep.subr.mxu0 0.0
    %114 = vmatpush1.msra.mxu0 0.0
    %115 = vmatprep.subr.mxu0 0.0
    %116 = vmatpush1.msra.mxu0 0.0
    %117 = vmatprep.subr.mxu0 0.0
    %118 = vmatpush1.msra.mxu0 0.0
    %119 = vmatprep.subr.mxu0 0.0
    %120 = vmatpush1.msra.mxu0 0.0
    %121 = vmatprep.subr.mxu0 0.0
    %122 = vmatpush1.msra.mxu0 0.0
    %123 = vmatprep.subr.mxu0 0.0
    %124 = vmatpush1.msra.mxu0 0.0
    %125 = vmatprep.subr.mxu0 0.0
    %126 = vmatpush1.msra.mxu0 0.0
    %127 = vmatprep.subr.mxu0 0.0
    %128 = vmatpush1.msra.mxu0 0.0
    %129 = vmatprep.subr.mxu0 0.0
    %130 = vmatpush1.msra.mxu0 0.0
    %131 = vmatprep.subr.mxu0 0.0
    %132 = vmatpush1.msra.mxu0 0.0
    %133 = vmatprep.subr.mxu0 0.0
    %134 = vmatpush1.msra.mxu0 0.0
    %135 = vmatprep.subr.mxu0 0.0
    %136 = vmatpush1.msra.mxu0 0.0
    %137 = vmatprep.subr.mxu0 0.0
    %138 = vmatpush1.msra.mxu0 0.0
    %139 = vmatprep.subr.mxu0 0.0
    %140 = vmatpush1.msra.mxu0 0.0
    %141 = vmatprep.subr.mxu0 0.0
    %142 = vmatpush1.msra.mxu0 0.0
    %143 = vmatprep.subr.mxu0 0.0
    %144 = vmatpush1.msra.mxu0 0.0
    %145 = vmatprep.subr.mxu0 0.0
    %146 = vmatpush1.msra.mxu0 0.0
    %147 = vmatprep.mubr.f32.mxu0 0.0
    %148 = vmatmul.mubr.f32.gmra.mrb[0].mxu0 %v66
    %v149 = vpop.f32.mrb[0].mxu0
    %v150 = vadd.f32 %v62, %v149
    %v151 = vpop.f32.mrb[0].mxu0
    %152 = vmatprep.mubr.f32.mxu0 0.0
    %153 = vmatmul.mubr.f32.gmra.mrb[0].mxu0 %v69
    %v154 = vpop.f32.mrb[0].mxu0
    %v155 = vadd.f32 %v62, %v154
    %v156 = vpop.f32.mrb[0].mxu0
    %157 = vmatprep.mubr.f32.mxu0 0.0
    %158 = vmatmul.mubr.f32.gmra.mrb[0].mxu0 %v72
    %v159 = vpop.f32.mrb[0].mxu0
    %v160 = vadd.f32 %v62, %v159
    %v161 = vpop.f32.mrb[0].mxu0
    %162 = vmatprep.mubr.f32.mxu0 0.0
    %163 = vmatmul.mubr.f32.gmra.mrb[0].mxu0 %v75
    %v164 = vpop.f32.mrb[0].mxu0
    %v165 = vadd.f32 %v62, %v164
    %v166 = vpop.f32.mrb[0].mxu0
    %167 = vmatprep.mubr.f32.mxu0 0.0
    %168 = vmatmul.mubr.f32.gmra.mrb[0].mxu0 %v78
    %v169 = vpop.f32.mrb[0].mxu0
    %v170 = vadd.f32 %v62, %v169
    %v171 = vpop.f32.mrb[0].mxu0
    %172 = vmatprep.mubr.f32.mxu0 0.0
    %173 = vmatmul.mubr.f32.gmra.mrb[0].mxu0 %v81
    %v174 = vpop.f32.mrb[0].mxu0
    %v175 = vadd.f32 %v62, %v174
    %v176 = vpop.f32.mrb[0].mxu0
    %177 = vdwg.mxu0
    %v178 = vmul.f32 %v150, %v150
    %v179 = vmul.f32 %v155, %v155
    %v180 = vmul.f32 %v160, %v160
    %v181 = vmul.f32 %v165, %v165
    %v182 = vmul.f32 %v170, %v170
    %v183 = vmul.f32 %v175, %v175
    %184 = vadd.xlane.f32.xlu0 %v178
    %v185 = vpop.xlane.xlu0 %184
    %186 = vadd.xlane.f32.xlu0 %v179
    %v187 = vpop.xlane.xlu0 %186
    %188 = vadd.xlane.f32.xlu0 %v180
    %v189 = vpop.xlane.xlu0 %188
    %190 = vadd.xlane.f32.xlu0 %v181
    %v191 = vpop.xlane.xlu0 %190
    %192 = vadd.xlane.f32.xlu0 %v182
    %v193 = vpop.xlane.xlu0 %192
    %194 = vadd.xlane.f32.xlu0 %v183
    %v195 = vpop.xlane.xlu0 %194
    %v196 = vmax.f32 %v185, 1e-24
    %v197 = vmax.f32 %v187, 1e-24
    %v198 = vmax.f32 %v189, 1e-24
    %v199 = vmax.f32 %v191, 1e-24
    %v200 = vmax.f32 %v193, 1e-24
    %v201 = vmax.f32 %v195, 1e-24
    %v202 = vrsqrt.pop %v196
    %v203 = vrsqrt.pop %v197
    %v204 = vrsqrt.pop %v198
    %v205 = vrsqrt.pop %v199
    %v206 = vrsqrt.pop %v200
    %v207 = vrsqrt.pop %v201
    %v208 = vmul.f32 %v150, %v202
    %v209 = vmul.f32 %v155, %v203
    %v210 = vmul.f32 %v160, %v204
    %v211 = vmul.f32 %v165, %v205
    %v212 = vmul.f32 %v170, %v206
    %v213 = vmul.f32 %v175, %v207
    %214 = vst [vmem:[#allocation7] sm:$0xff] %v208
    %215 = vst [vmem:[#allocation7 + $0x8] sm:$0xff] %v209
    %216 = vst [vmem:[#allocation7 + $0x10] sm:$0xff] %v210
    %217 = vst [vmem:[#allocation7 + $0x18] sm:$0xff] %v211
    %218 = vst [vmem:[#allocation7 + $0x20] sm:$0xff] %v212
    %219 = vst [vmem:[#allocation7 + $0x28] sm:$0xff] %v213
    // Predicated region
    $region22: #{tpu_custom_call.1} parent=1 // pred_check
      _
    $region23: #{tpu_custom_call.1} parent=1 // pred_check_branch
      %221 = sbr.rel (0) target = $region25
    $region24: #{tpu_custom_call.1} parent=1 // pred_region
      %s223 = ssub.s32 768, 768
      %224 = vsyncadd [#allocation4], %s223
      %s225 = sshll.u32 [#allocation7], 4
      %s226 = int_to_ptr.vmem [resolvable:$true] %s225
      %231 = dma.vmem_to_hbm [thread:$0]  %s226, 768, %s3, [#allocation4], 128, 128, 8
    $region25: #{tpu_custom_call.1} parent=1 // pred_fallthru
      _
    // Predicated region
    $region26: #{tpu_custom_call.1} parent=1 // pred_check
      _
    $region27: #{tpu_custom_call.1} parent=1 // pred_check_branch
      %233 = sbr.rel (0) target = $region29
    $region28: #{tpu_custom_call.1} parent=1 // pred_region
      %234 = dma.done [#allocation4], 768
    $region29: #{tpu_custom_call.1} parent=1 // pred_fallthru
      _
    %235 = vsyncpa [#allocation3], 1
    %236 = vsyncpa [#allocation6], 1
    %237 = vsyncpa [#allocation4], 1

</llo_original>
